<compile_context>
chip_gen: v7x
topology: tpu7x:2x2x1
jax: 0.10.0
libtpu: 0.0.40
codegen_flags: <defaults>
</compile_context>

<pallas_src>
import jax
import jax.numpy as jnp
from jax.experimental import pallas as pl
from jax.experimental.pallas import tpu as pltpu


def _round_up(x, m):
    return (x + m - 1) // m * m


def decoder_kernel(x_ref, w1_ref, b1_ref, w2_ref, b2_ref, o_ref):
    # Cast the activation tile to the MXU operand dtype in-kernel (VPU cast,
    # no extra HBM traffic).  Accumulation is f32 via preferred_element_type.
    x = x_ref[...].astype(w1_ref.dtype)
    # First linear: (bt, L) @ (L, Hp) + (1, Hp)
    h = jnp.dot(x, w1_ref[...], preferred_element_type=jnp.float32)
    # Bias + ReLU in f32 on the VPU (v5e has no bf16 VPU path).
    h = jnp.maximum(h + b1_ref[...], 0.0)
    # Second linear: (bt, Hp) @ (Hp, D) + (1, D)
    h = h.astype(w2_ref.dtype)
    out = jnp.dot(h, w2_ref[...], preferred_element_type=jnp.float32)
    o_ref[...] = (out + b2_ref[...]).astype(o_ref.dtype)


def decoder_forward(x, w1, b1, w2, b2, *, batch_tile=None, mxu_dtype=None,
                    out_dtype=None, min_parallel_steps=8):
    """x: [B, latent]; w1: [latent, hidden]; b1: [1, hidden];
       w2: [hidden, input_dim]; b2: [1, input_dim]  ->  [B, input_dim]

    mxu_dtype:  None (matmul operands keep their dtype) or jnp.bfloat16 for the
                MXU operands (recommended on v6e/v7x).  Accumulation stays f32.
    out_dtype:  output dtype (defaults to x.dtype); bf16 halves the output HBM
                stream on this mem-bound op.
    """
    B, L = x.shape
    H = w1.shape[1]
    D = w2.shape[1]
    if out_dtype is None:
        out_dtype = x.dtype

    # --- Pad ONLY the hidden dim (weights + bias) to full 128 lanes. -------
    # Exact: padded b1 cols are 0 -> ReLU(0)=0 -> padded W2 rows are 0.
    # (On v6e/v7x one could use 256 here if the op ever becomes MXU-bound;
    #  at these sizes it is firmly HBM-bound, so 128 is fine everywhere.)
    Hp = _round_up(H, 128)
    w1p = jnp.pad(w1, ((0, 0), (0, Hp - H)))
    b1p = jnp.pad(b1, ((0, 0), (0, Hp - H))).astype(jnp.float32)
    w2p = jnp.pad(w2, ((0, Hp - H), (0, 0)))
    b2p = b2.astype(jnp.float32)
    if mxu_dtype is not None:
        w1p = w1p.astype(mxu_dtype)
        w2p = w2p.astype(mxu_dtype)

    # --- Batch tiling: no padding of B; grid = cdiv(B, bt). ----------------
    use_bf16 = (mxu_dtype == jnp.bfloat16) or (x.dtype == jnp.bfloat16)
    sub = 16 if use_bf16 else 8                      # sublane granularity
    if batch_tile is None:
        batch_tile = 4096 if use_bf16 else 2048
    bt = min(batch_tile, _round_up(B, sub))
    # Keep >= min_parallel_steps grid steps for large batches so the
    # "parallel" axis can shard across both TensorCores on v7x.
    if min_parallel_steps and B > min_parallel_steps * sub:
        bt = min(bt, _round_up(pl.cdiv(B, min_parallel_steps), sub))
    bt = max(sub, _round_up(bt, sub))
    grid = (pl.cdiv(B, bt),)

    # --- VMEM budget (double-buffered x/out tiles, resident weights x2 by
    #     default double-buffering, plus the fused bt x Hp f32 hidden temp).
    x_bytes = jnp.dtype(x.dtype).itemsize
    w_bytes = jnp.dtype(w1p.dtype).itemsize
    o_bytes = jnp.dtype(out_dtype).itemsize
    budget = (2 * bt * L * x_bytes
              + 2 * bt * D * o_bytes
              + 2 * ((L * Hp + Hp * D) * w_bytes + (Hp + D) * 4)
              + bt * Hp * 4)
    vmem_limit = int(min(max(32 * 1024 * 1024, 2 * budget), 64 * 1024 * 1024))

    # --- Advisory cost estimate so XLA overlaps neighbors with the call. ---
    cost = pl.CostEstimate(
        flops=2 * B * (L * H + H * D),
        transcendentals=0,
        bytes_accessed=(B * L * x_bytes + B * D * o_bytes
                        + (L * Hp + Hp * D) * w_bytes + (Hp + D) * 4),
    )

    out = pl.pallas_call(
        decoder_kernel,
        out_shape=jax.ShapeDtypeStruct((B, D), out_dtype),
        grid_spec=pltpu.PrefetchScalarGridSpec(
            num_scalar_prefetch=0,
            grid=grid,
            in_specs=[
                pl.BlockSpec((bt, L), lambda i: (i, 0)),   # x tile, true last dim
                pl.BlockSpec((L, Hp), lambda i: (0, 0)),   # W1 (resident)
                pl.BlockSpec((1, Hp), lambda i: (0, 0)),   # b1 (resident)
                pl.BlockSpec((Hp, D), lambda i: (0, 0)),   # W2 (resident)
                pl.BlockSpec((1, D), lambda i: (0, 0)),    # b2 (resident)
            ],
            out_specs=pl.BlockSpec((bt, D), lambda i: (i, 0)),  # true last dim
        ),
        compiler_params=pltpu.CompilerParams(
            dimension_semantics=("parallel",),   # batch steps shard across TCs
            vmem_limit_bytes=vmem_limit,
        ),
        cost_estimate=cost,
    )(x, w1p, b1p, w2p, b2p)
    return out


if __name__ == "__main__":
    # Module hyper-parameters (Decoder defaults, small input_dim for the demo)
    latent_dim = 10
    hidden_dim = 100
    input_dim = 32
    batch = 16

    key = jax.random.PRNGKey(0)
    kx, kw1, kb1, kw2, kb2 = jax.random.split(key, 5)

    # PyTorch Linear default init range: U(-1/sqrt(fan_in), 1/sqrt(fan_in)).
    # Weights stored pre-transposed as [in, out] so the kernel does x @ W + b.
    lim1 = 1.0 / jnp.sqrt(latent_dim)
    lim2 = 1.0 / jnp.sqrt(hidden_dim)
    w1 = jax.random.uniform(kw1, (latent_dim, hidden_dim), jnp.float32, -lim1, lim1)
    b1 = jax.random.uniform(kb1, (1, hidden_dim), jnp.float32, -lim1, lim1)
    w2 = jax.random.uniform(kw2, (hidden_dim, input_dim), jnp.float32, -lim2, lim2)
    b2 = jax.random.uniform(kb2, (1, input_dim), jnp.float32, -lim2, lim2)

    x = jax.random.normal(kx, (batch, latent_dim), jnp.float32)

    # Reference in plain JAX (same semantics as the torch module).
    ref = jnp.maximum(x @ w1 + b1, 0.0) @ w2 + b2

    # --- f32 MXU path (exact, default) ---
    out = decoder_forward(x, w1, b1, w2, b2)
    out = jax.block_until_ready(out)
    assert out.shape == (batch, input_dim)
    assert jnp.allclose(out, ref, atol=1e-4, rtol=1e-4), "f32 mismatch vs reference"

    # --- ragged batch (exercises the cdiv grid / partial last tile) ---
    xr = x[:13]
    out_r = jax.block_until_ready(decoder_forward(xr, w1, b1, w2, b2))
    assert out_r.shape == (13, input_dim)
    assert jnp.allclose(out_r, ref[:13], atol=1e-4, rtol=1e-4), "ragged-batch mismatch"

    # --- bf16 MXU-operand path with bf16 output (perf path for v6e/v7x) ---
    out_bf16 = decoder_forward(x, w1, b1, w2, b2,
                               mxu_dtype=jnp.bfloat16, out_dtype=jnp.bfloat16)
    out_bf16 = jax.block_until_ready(out_bf16)
    assert out_bf16.shape == (batch, input_dim)
    assert out_bf16.dtype == jnp.bfloat16
    assert bool(jnp.isfinite(out_bf16.astype(jnp.float32)).all())
    assert float(jnp.max(jnp.abs(out_bf16.astype(jnp.float32) - ref))) < 0.5, \
        "bf16 path diverged"

    print("KERNEL_OK")
</pallas_src>

<mosaic_0001>
module attributes {stable_mosaic.version = 11 : i64} {
  func.func @decoder_kernel(%arg0: i32, %arg1: memref<16x10xf32, #tpu.memory_space<vmem>>, %arg2: memref<10x128xf32, #tpu.memory_space<vmem>>, %arg3: memref<1x128xf32, #tpu.memory_space<vmem>>, %arg4: memref<128x32xf32, #tpu.memory_space<vmem>>, %arg5: memref<1x32xf32, #tpu.memory_space<vmem>>, %arg6: memref<16x32xf32, #tpu.memory_space<vmem>>) attributes {dimension_semantics = [#tpu.dimension_semantics<parallel>], iteration_bounds = array<i64: 1>, scalar_prefetch = 0 : i64, scratch_operands = 0 : i64, tpu.core_type = #tpu.core_type<tc>, window_params = [{transform_indices = @transform_0, window_bounds = array<i64: 16, 10>}, {pipeline_mode = #tpu.pipeline_mode<synchronous>, transform_indices = @transform_1, window_bounds = array<i64: 10, 128>}, {pipeline_mode = #tpu.pipeline_mode<synchronous>, transform_indices = @transform_2, window_bounds = array<i64: 1, 128>}, {pipeline_mode = #tpu.pipeline_mode<synchronous>, transform_indices = @transform_3, window_bounds = array<i64: 128, 32>}, {pipeline_mode = #tpu.pipeline_mode<synchronous>, transform_indices = @transform_4, window_bounds = array<i64: 1, 32>}, {transform_indices = @transform_5, window_bounds = array<i64: 16, 32>}]} {
    %c0 = arith.constant 0 : index
    %c0_0 = arith.constant 0 : index
    %0 = vector.load %arg1[%c0, %c0_0] : memref<16x10xf32, #tpu.memory_space<vmem>>, vector<16x10xf32>
    %c0_1 = arith.constant 0 : index
    %c0_2 = arith.constant 0 : index
    %1 = vector.load %arg2[%c0_1, %c0_2] : memref<10x128xf32, #tpu.memory_space<vmem>>, vector<10x128xf32>
    %cst = arith.constant dense<0.000000e+00> : vector<16x128xf32>
    %2 = tpu.matmul %0, %1, %cst {dimension_numbers = #tpu.dot_dimension_numbers<[1], [0], [0], [1], [0, 0, 1, 1], [], []>} : vector<16x10xf32>, vector<10x128xf32>, vector<16x128xf32> -> vector<16x128xf32>
    %c0_3 = arith.constant 0 : index
    %c0_4 = arith.constant 0 : index
    %3 = vector.load %arg3[%c0_3, %c0_4] : memref<1x128xf32, #tpu.memory_space<vmem>>, vector<1x128xf32>
    %4 = vector.broadcast %3 : vector<1x128xf32> to vector<16x128xf32>
    %5 = arith.addf %2, %4 : vector<16x128xf32>
    %cst_5 = arith.constant 0.000000e+00 : f32
    %6 = vector.broadcast %cst_5 : f32 to vector<16x128xf32>
    %7 = arith.maximumf %5, %6 : vector<16x128xf32>
    %c0_6 = arith.constant 0 : index
    %c0_7 = arith.constant 0 : index
    %8 = vector.load %arg4[%c0_6, %c0_7] : memref<128x32xf32, #tpu.memory_space<vmem>>, vector<128x32xf32>
    %cst_8 = arith.constant dense<0.000000e+00> : vector<16x32xf32>
    %9 = tpu.matmul %7, %8, %cst_8 {dimension_numbers = #tpu.dot_dimension_numbers<[1], [0], [0], [1], [0, 0, 1, 1], [], []>} : vector<16x128xf32>, vector<128x32xf32>, vector<16x32xf32> -> vector<16x32xf32>
    %c0_9 = arith.constant 0 : index
    %c0_10 = arith.constant 0 : index
    %10 = vector.load %arg5[%c0_9, %c0_10] : memref<1x32xf32, #tpu.memory_space<vmem>>, vector<1x32xf32>
    %11 = vector.broadcast %10 : vector<1x32xf32> to vector<16x32xf32>
    %12 = arith.addf %9, %11 : vector<16x32xf32>
    %c0_11 = arith.constant 0 : index
    %c0_12 = arith.constant 0 : index
    %13 = vector.load %arg6[%c0_11, %c0_12] : memref<16x32xf32, #tpu.memory_space<vmem>>, vector<16x32xf32>
    tpu.vector_store %arg6[%c0_11, %c0_12], %12 {strides = array<i32>} : memref<16x32xf32, #tpu.memory_space<vmem>>, vector<16x32xf32>,
    return
  }
  func.func @transform_0(%arg0: i32) -> (i32, i32) {
    %c0_i32 = arith.constant 0 : i32
    %c0_i32_0 = arith.constant 0 : i32
    return %arg0, %c0_i32 : i32, i32
  }
  func.func @transform_1(%arg0: i32) -> (i32, i32) {
    %c0_i32 = arith.constant 0 : i32
    %c0_i32_0 = arith.constant 0 : i32
    %c0_i32_1 = arith.constant 0 : i32
    return %c0_i32, %c0_i32_0 : i32, i32
  }
  func.func @transform_2(%arg0: i32) -> (i32, i32) {
    %c0_i32 = arith.constant 0 : i32
    %c0_i32_0 = arith.constant 0 : i32
    %c0_i32_1 = arith.constant 0 : i32
    return %c0_i32, %c0_i32_0 : i32, i32
  }
  func.func @transform_3(%arg0: i32) -> (i32, i32) {
    %c0_i32 = arith.constant 0 : i32
    %c0_i32_0 = arith.constant 0 : i32
    %c0_i32_1 = arith.constant 0 : i32
    return %c0_i32, %c0_i32_0 : i32, i32
  }
  func.func @transform_4(%arg0: i32) -> (i32, i32) {
    %c0_i32 = arith.constant 0 : i32
    %c0_i32_0 = arith.constant 0 : i32
    %c0_i32_1 = arith.constant 0 : i32
    return %c0_i32, %c0_i32_0 : i32, i32
  }
  func.func @transform_5(%arg0: i32) -> (i32, i32) {
    %c0_i32 = arith.constant 0 : i32
    %c0_i32_0 = arith.constant 0 : i32
    return %arg0, %c0_i32 : i32, i32
  }
}

</mosaic_0001>

<llo_original>
// kernel: tpu_custom_call.1
$region0: #{tpu_custom_call.1}
  #allocation0 [shape = 'u32[]', space=smem, size = 0x4, offset = 0x4, fixed_abs, tag = 'smem constant byte address 0x4 - core index']
  #allocation1 [shape = 'u32[144,128]{1,0:T(1,128)}', space=vmem, size = 0x12000, scoped, tag = 'internal scratch']
  %s0 = inlined_call_operand.vmem [shape: f32[16,10], index: 0, kind: input, shape index: {}]
  %s1 = inlined_call_operand.vmem [shape: f32[10,128], index: 1, kind: input, shape index: {}]
  %s2 = inlined_call_operand.vmem [shape: f32[1,128], index: 2, kind: input, shape index: {}]
  %s3 = inlined_call_operand.vmem [shape: f32[128,32], index: 3, kind: input, shape index: {}]
  %s4 = inlined_call_operand.vmem [shape: f32[1,32], index: 4, kind: input, shape index: {}]
  %s5 = inlined_call_operand.hbm [shape: f32[16,32], index: 5, kind: output, shape index: {}]
  %s6 = sld [smem:[#allocation0]]
  $region30: #{tpu_custom_call.1} parent=0
    _
  %s8 = ssub.s32 1, %s6
  %s9 = scalar_select 0, %s8, %s6
  $region1: #{tpu_custom_call.1} parent=0
    #allocation2 [shape = 'u8[8192]{0}', space=vmem, size = 0x2000, scoped, tag = 'output window, operand 0, single buffered']
    #allocation3 [shape = 's32[1]{0}', space=sflag, size = 0x4, scoped, tag = 'scoped memory for tpu_custom_call.1']
    %10 = vsyncpa [#allocation3], 0
    // Predicated region
    $region2: #{tpu_custom_call.1} parent=1 // pred_check
      _
    $region3: #{tpu_custom_call.1} parent=1 // pred_check_branch
      %12 = sbr.rel (0) target = $region5
    $region4: #{tpu_custom_call.1} parent=1 // pred_region
      _
    $region5: #{tpu_custom_call.1} parent=1 // pred_fallthru
      _
    // Predicated region
    $region6: #{tpu_custom_call.1} parent=1 // pred_check
      _
    $region7: #{tpu_custom_call.1} parent=1 // pred_check_branch
      %14 = sbr.rel (0) target = $region9
    $region8: #{tpu_custom_call.1} parent=1 // pred_region
      _
    $region9: #{tpu_custom_call.1} parent=1 // pred_fallthru
      _
    // Predicated region
    $region10: #{tpu_custom_call.1} parent=1 // pred_check
      _
    $region11: #{tpu_custom_call.1} parent=1 // pred_check_branch
      %16 = sbr.rel (0) target = $region13
    $region12: #{tpu_custom_call.1} parent=1 // pred_region
      _
    $region13: #{tpu_custom_call.1} parent=1 // pred_fallthru
      _
    // Predicated region
    $region14: #{tpu_custom_call.1} parent=1 // pred_check
      _
    $region15: #{tpu_custom_call.1} parent=1 // pred_check_branch
      %18 = sbr.rel (0) target = $region17
    $region16: #{tpu_custom_call.1} parent=1 // pred_region
      _
    $region17: #{tpu_custom_call.1} parent=1 // pred_fallthru
      _
    // Predicated region
    $region18: #{tpu_custom_call.1} parent=1 // pred_check
      _
    $region19: #{tpu_custom_call.1} parent=1 // pred_check_branch
      %20 = sbr.rel (0) target = $region21
    $region20: #{tpu_custom_call.1} parent=1 // pred_region
      _
    $region21: #{tpu_custom_call.1} parent=1 // pred_fallthru
      _
    %v21 = vld [vmem:[%s0] sm:$0xff]
    %v22 = vld [vmem:[%s0 + $0x8] sm:$0xff]
    %v23 = vld [vmem:[%s1] sm:$0xff]
    %v24 = vld [vmem:[%s1 + $0x8] sm:$0x3]
    %v25 = vld [vmem:[%s2] sm:$0x1]
    %v27 = vlaneseq
    %v28 = vshrl.u32 %v27, 7
    %v29 = vsub.s32 0, %v28
    %v30 = vrot.slane %v25, %v29
    %vm32 = vcmask 80896
    %v34 = vsel %vm32, %v21, 0
    %v37 = vsel %vm32, %v22, 0
    %vm39 = vcmask 1041408
    %v41 = vsel %vm39, %v24, 0
    %43 = vmatprep.subr.mxu0 0.0
    %44 = vmatpush1.msra.mxu0 %v23
    %45 = vmatprep.subr.mxu0 0.0
    %46 = vmatpush1.msra.mxu0 %v41
    %47 = vmatprep.subr.mxu0 0.0
    %48 = vmatpush1.msra.mxu0 0.0
    %49 = vmatprep.subr.mxu0 0.0
    %50 = vmatpush1.msra.mxu0 0.0
    %51 = vmatprep.subr.mxu0 0.0
    %52 = vmatpush1.msra.mxu0 0.0
    %53 = vmatprep.subr.mxu0 0.0
    %54 = vmatpush1.msra.mxu0 0.0
    %55 = vmatprep.subr.mxu0 0.0
    %56 = vmatpush1.msra.mxu0 0.0
    %57 = vmatprep.subr.mxu0 0.0
    %58 = vmatpush1.msra.mxu0 0.0
    %59 = vmatprep.subr.mxu0 0.0
    %60 = vmatpush1.msra.mxu0 0.0
    %61 = vmatprep.subr.mxu0 0.0
    %62 = vmatpush1.msra.mxu0 0.0
    %63 = vmatprep.subr.mxu0 0.0
    %64 = vmatpush1.msra.mxu0 0.0
    %65 = vmatprep.subr.mxu0 0.0
    %66 = vmatpush1.msra.mxu0 0.0
    %67 = vmatprep.subr.mxu0 0.0
    %68 = vmatpush1.msra.mxu0 0.0
    %69 = vmatprep.subr.mxu0 0.0
    %70 = vmatpush1.msra.mxu0 0.0
    %71 = vmatprep.subr.mxu0 0.0
    %72 = vmatpush1.msra.mxu0 0.0
    %73 = vmatprep.subr.mxu0 0.0
    %74 = vmatpush1.msra.mxu0 0.0
    %75 = vmatprep.subr.mxu0 0.0
    %76 = vmatpush1.msra.mxu0 0.0
    %77 = vmatprep.subr.mxu0 0.0
    %78 = vmatpush1.msra.mxu0 0.0
    %79 = vmatprep.subr.mxu0 0.0
    %80 = vmatpush1.msra.mxu0 0.0
    %81 = vmatprep.subr.mxu0 0.0
    %82 = vmatpush1.msra.mxu0 0.0
    %83 = vmatprep.subr.mxu0 0.0
    %84 = vmatpush1.msra.mxu0 0.0
    %85 = vmatprep.subr.mxu0 0.0
    %86 = vmatpush1.msra.mxu0 0.0
    %87 = vmatprep.subr.mxu0 0.0
    %88 = vmatpush1.msra.mxu0 0.0
    %89 = vmatprep.subr.mxu0 0.0
    %90 = vmatpush1.msra.mxu0 0.0
    %91 = vmatprep.subr.mxu0 0.0
    %92 = vmatpush1.msra.mxu0 0.0
    %93 = vmatprep.subr.mxu0 0.0
    %94 = vmatpush1.msra.mxu0 0.0
    %95 = vmatprep.subr.mxu0 0.0
    %96 = vmatpush1.msra.mxu0 0.0
    %97 = vmatprep.subr.mxu0 0.0
    %98 = vmatpush1.msra.mxu0 0.0
    %99 = vmatprep.subr.mxu0 0.0
    %100 = vmatpush1.msra.mxu0 0.0
    %101 = vmatprep.subr.mxu0 0.0
    %102 = vmatpush1.msra.mxu0 0.0
    %103 = vmatprep.subr.mxu0 0.0
    %104 = vmatpush1.msra.mxu0 0.0
    %105 = vmatprep.subr.mxu0 0.0
    %106 = vmatpush1.msra.mxu0 0.0
    %107 = vmatprep.mubr.f32.mxu0 0.0
    %108 = vmatmul.mubr.f32.gmra.mrb[0].mxu0 %v34
    %v109 = vpop.f32.mrb[0].mxu0
    %v110 = vadd.f32 %v30, %v109
    %v111 = vpop.f32.mrb[0].mxu0
    %112 = vmatprep.mubr.f32.mxu0 0.0
    %113 = vmatmul.mubr.f32.gmra.mrb[0].mxu0 %v37
    %v114 = vpop.f32.mrb[0].mxu0
    %v115 = vadd.f32 %v30, %v114
    %v116 = vpop.f32.mrb[0].mxu0
    %117 = vdwg.mxu0
    %v118 = vmax.f32 %v110, 0.0
    %v119 = vmax.f32 %v115, 0.0
    %v120 = vld [vmem:[%s3] sm:$0xff]
    %v121 = vld [vmem:[%s3 + $0x8] sm:$0xff]
    %v122 = vld [vmem:[%s3 + $0x10] sm:$0xff]
    %v123 = vld [vmem:[%s3 + $0x18] sm:$0xff]
    %v124 = vld [vmem:[%s3 + $0x20] sm:$0xff]
    %v125 = vld [vmem:[%s3 + $0x28] sm:$0xff]
    %v126 = vld [vmem:[%s3 + $0x30] sm:$0xff]
    %v127 = vld [vmem:[%s3 + $0x38] sm:$0xff]
    %v128 = vld [vmem:[%s3 + $0x40] sm:$0xff]
    %v129 = vld [vmem:[%s3 + $0x48] sm:$0xff]
    %v130 = vld [vmem:[%s3 + $0x50] sm:$0xff]
    %v131 = vld [vmem:[%s3 + $0x58] sm:$0xff]
    %v132 = vld [vmem:[%s3 + $0x60] sm:$0xff]
    %v133 = vld [vmem:[%s3 + $0x68] sm:$0xff]
    %v134 = vld [vmem:[%s3 + $0x70] sm:$0xff]
    %v135 = vld [vmem:[%s3 + $0x78] sm:$0xff]
    %v136 = vld [vmem:[%s4] sm:$0x1]
    %v138 = vlaneseq
    %v139 = vshrl.u32 %v138, 7
    %v140 = vsub.s32 0, %v139
    %v141 = vrot.slane %v136, %v140
    %143 = vmatprep.subr.mxu0 0.0
    %144 = vmatpush1.msra.mxu0 %v120
    %145 = vmatprep.subr.mxu0 0.0
    %146 = vmatpush1.msra.mxu0 %v121
    %147 = vmatprep.subr.mxu0 0.0
    %148 = vmatpush1.msra.mxu0 %v122
    %149 = vmatprep.subr.mxu0 0.0
    %150 = vmatpush1.msra.mxu0 %v123
    %151 = vmatprep.subr.mxu0 0.0
    %152 = vmatpush1.msra.mxu0 %v124
    %153 = vmatprep.subr.mxu0 0.0
    %154 = vmatpush1.msra.mxu0 %v125
    %155 = vmatprep.subr.mxu0 0.0
    %156 = vmatpush1.msra.mxu0 %v126
    %157 = vmatprep.subr.mxu0 0.0
    %158 = vmatpush1.msra.mxu0 %v127
    %159 = vmatprep.subr.mxu0 0.0
    %160 = vmatpush1.msra.mxu0 %v128
    %161 = vmatprep.subr.mxu0 0.0
    %162 = vmatpush1.msra.mxu0 %v129
    %163 = vmatprep.subr.mxu0 0.0
    %164 = vmatpush1.msra.mxu0 %v130
    %165 = vmatprep.subr.mxu0 0.0
    %166 = vmatpush1.msra.mxu0 %v131
    %167 = vmatprep.subr.mxu0 0.0
    %168 = vmatpush1.msra.mxu0 %v132
    %169 = vmatprep.subr.mxu0 0.0
    %170 = vmatpush1.msra.mxu0 %v133
    %171 = vmatprep.subr.mxu0 0.0
    %172 = vmatpush1.msra.mxu0 %v134
    %173 = vmatprep.subr.mxu0 0.0
    %174 = vmatpush1.msra.mxu0 %v135
    %175 = vmatprep.subr.mxu0 0.0
    %176 = vmatpush1.msra.mxu0 0.0
    %177 = vmatprep.subr.mxu0 0.0
    %178 = vmatpush1.msra.mxu0 0.0
    %179 = vmatprep.subr.mxu0 0.0
    %180 = vmatpush1.msra.mxu0 0.0
    %181 = vmatprep.subr.mxu0 0.0
    %182 = vmatpush1.msra.mxu0 0.0
    %183 = vmatprep.subr.mxu0 0.0
    %184 = vmatpush1.msra.mxu0 0.0
    %185 = vmatprep.subr.mxu0 0.0
    %186 = vmatpush1.msra.mxu0 0.0
    %187 = vmatprep.subr.mxu0 0.0
    %188 = vmatpush1.msra.mxu0 0.0
    %189 = vmatprep.subr.mxu0 0.0
    %190 = vmatpush1.msra.mxu0 0.0
    %191 = vmatprep.subr.mxu0 0.0
    %192 = vmatpush1.msra.mxu0 0.0
    %193 = vmatprep.subr.mxu0 0.0
    %194 = vmatpush1.msra.mxu0 0.0
    %195 = vmatprep.subr.mxu0 0.0
    %196 = vmatpush1.msra.mxu0 0.0
    %197 = vmatprep.subr.mxu0 0.0
    %198 = vmatpush1.msra.mxu0 0.0
    %199 = vmatprep.subr.mxu0 0.0
    %200 = vmatpush1.msra.mxu0 0.0
    %201 = vmatprep.subr.mxu0 0.0
    %202 = vmatpush1.msra.mxu0 0.0
    %203 = vmatprep.subr.mxu0 0.0
    %204 = vmatpush1.msra.mxu0 0.0
    %205 = vmatprep.subr.mxu0 0.0
    %206 = vmatpush1.msra.mxu0 0.0
    %207 = vmatprep.mubr.f32.mxu0 0.0
    %208 = vmatmul.mubr.f32.gmra.mrb[0].mxu0 %v118
    %v209 = vpop.f32.mrb[0].mxu0
    %v210 = vadd.f32 %v141, %v209
    %v211 = vpop.f32.mrb[0].mxu0
    %212 = vmatprep.mubr.f32.mxu0 0.0
    %213 = vmatmul.mubr.f32.gmra.mrb[0].mxu0 %v119
    %v214 = vpop.f32.mrb[0].mxu0
    %v215 = vadd.f32 %v141, %v214
    %v216 = vpop.f32.mrb[0].mxu0
    %217 = vdwg.mxu0
    %vm218 = vcmask 261120
    %219 = vst.msk [vmem:[#allocation2] sm:$0xff] %vm218, %v210
    %220 = vst.msk [vmem:[#allocation2 + $0x8] sm:$0xff] %vm218, %v215
    // Predicated region
    $region22: #{tpu_custom_call.1} parent=1 // pred_check
      _
    $region23: #{tpu_custom_call.1} parent=1 // pred_check_branch
      %222 = sbr.rel (0) target = $region25
    $region24: #{tpu_custom_call.1} parent=1 // pred_region
      %s224 = ssub.s32 256, 256
      %225 = vsyncadd [#allocation3], %s224
      %s226 = sshll.u32 [#allocation2], 4
      %s227 = int_to_ptr.vmem [resolvable:$true] %s226
      %232 = dma.vmem_to_hbm [thread:$0]  %s227, 256, %s5, [#allocation3], 128, 128, 8
    $region25: #{tpu_custom_call.1} parent=1 // pred_fallthru
      _
    // Predicated region
    $region26: #{tpu_custom_call.1} parent=1 // pred_check
      _
    $region27: #{tpu_custom_call.1} parent=1 // pred_check_branch
      %234 = sbr.rel (0) target = $region29
    $region28: #{tpu_custom_call.1} parent=1 // pred_region
      %235 = dma.done [#allocation3], 256
    $region29: #{tpu_custom_call.1} parent=1 // pred_fallthru
      _
    %236 = vsyncpa [#allocation3], 1

</llo_original>
